<compile_context>
chip_gen: v5e
topology: v5e:2x2
jax: 0.10.0
libtpu: 0.0.40
codegen_flags: <defaults>
</compile_context>

<pallas_src>
import functools

import jax
import jax.numpy as jnp
from jax.experimental import pallas as pl
from jax.experimental.pallas import tpu as pltpu


# ----------------------------------------------------------------------------
# Pallas kernel: fused (resize + rearrange + Linear) matmul -> +bias -> ReLU ->
#                BN scale/shift (with 1/(m*grad_rate) pre-folded into scale/shift)
# ----------------------------------------------------------------------------
def _fused_kernel(x_ref, w_ref, b_ref, scale_ref, shift_ref, o_ref):
    # x_ref:     (tb, C*H*W)   flattened NCHW input rows
    # w_ref:     (C*H*W, N*D)  folded resize+rearrange+Linear weight
    # b_ref:     (1, N*D)      Linear bias, tiled over the d_model axis
    # scale_ref: (1, N*D)      BN gamma/sqrt(var+eps) * 1/(m*grad_rate), tiled
    # shift_ref: (1, N*D)      (beta - mean*scale) * 1/(m*grad_rate), tiled
    # o_ref:     (tb, N*D)     lane-dense output (multiple of 128 lanes)
    z = jnp.dot(x_ref[...], w_ref[...], preferred_element_type=jnp.float32)
    z = jnp.maximum(z + b_ref[...], 0.0)               # Linear bias + ReLU
    o_ref[...] = z * scale_ref[...] + shift_ref[...]   # BN + /(m*grad_rate), folded


def fused_linear_relu_bn(x2d, w_fold, bias2, scale2, shift2, *, max_rows_per_block=512):
    """x2d: (M, C*H*W) f32 -> (M, hidden_dim*d_model) f32 via one pallas_call."""
    M, K = x2d.shape
    N = w_fold.shape[1]

    # Single block if the whole batch fits comfortably in VMEM; otherwise tile rows
    # (zero-padded; padded rows are sliced off afterwards).
    if M <= max_rows_per_block:
        tb, Mp = M, M
    else:
        tb = max_rows_per_block                      # multiple of 8
        Mp = ((M + tb - 1) // tb) * tb
        if Mp != M:
            x2d = jnp.pad(x2d, ((0, Mp - M), (0, 0)))
    grid = (Mp // tb,)

    # NOTE: at larger hidden/feature sizes, cast x2d/w_fold to bf16 here (keeping
    # preferred_element_type=f32 accumulation) for v6e/v7x MXU throughput.
    out = pl.pallas_call(
        _fused_kernel,
        out_shape=jax.ShapeDtypeStruct((Mp, N), jnp.float32),
        grid_spec=pltpu.PrefetchScalarGridSpec(
            num_scalar_prefetch=0,
            grid=grid,
            in_specs=[
                pl.BlockSpec((tb, K), lambda i: (i, 0)),
                pl.BlockSpec((K, N), lambda i: (0, 0)),
                pl.BlockSpec((1, N), lambda i: (0, 0)),
                pl.BlockSpec((1, N), lambda i: (0, 0)),
                pl.BlockSpec((1, N), lambda i: (0, 0)),
            ],
            out_specs=pl.BlockSpec((tb, N), lambda i: (i, 0)),
        ),
        compiler_params=pltpu.CompilerParams(
            # Single-step grid: "arbitrary" (don't shard trivial work across cores).
            dimension_semantics=("arbitrary",) if grid[0] == 1 else ("parallel",),
            vmem_limit_bytes=32 * 1024 * 1024,
        ),
    )(x2d, w_fold, bias2, scale2, shift2)
    return out if Mp == M else out[:M]


# ----------------------------------------------------------------------------
# Host-side parameter folding
# ----------------------------------------------------------------------------
def _interp_matrix(out_size, in_size):
    """Row matrix reproducing F.interpolate(mode='bilinear', align_corners=False)
    along one axis."""
    o = jnp.arange(out_size, dtype=jnp.float32)
    src = (o + 0.5) * (in_size / out_size) - 0.5
    src = jnp.clip(src, 0.0, None)            # PyTorch clamps negative src to 0
    lo = jnp.floor(src)
    frac = src - lo
    lo_i = jnp.clip(lo.astype(jnp.int32), 0, in_size - 1)
    hi_i = jnp.clip(lo_i + 1, 0, in_size - 1)
    return (jax.nn.one_hot(lo_i, in_size, dtype=jnp.float32) * (1.0 - frac)[:, None]
            + jax.nn.one_hot(hi_i, in_size, dtype=jnp.float32) * frac[:, None])


def init_params(key, in_channels, d_model, hidden_dim):
    k_w, k_b = jax.random.split(key)
    in_features = in_channels * d_model
    # PyTorch nn.Linear default init: U(-1/sqrt(fan_in), 1/sqrt(fan_in))
    bound = 1.0 / jnp.sqrt(in_features)
    w = jax.random.uniform(k_w, (hidden_dim, in_features), jnp.float32, -bound, bound)
    b = jax.random.uniform(k_b, (hidden_dim,), jnp.float32, -bound, bound)
    # BatchNorm1d defaults (inference mode): gamma=1, beta=0, mean=0, var=1, eps=1e-5
    eps = 1e-5
    gamma = jnp.ones((hidden_dim,), jnp.float32)
    beta = jnp.zeros((hidden_dim,), jnp.float32)
    r_mean = jnp.zeros((hidden_dim,), jnp.float32)
    r_var = jnp.ones((hidden_dim,), jnp.float32)
    bn_scale = gamma / jnp.sqrt(r_var + eps)
    bn_shift = beta - r_mean * bn_scale
    return {'w': w, 'bias': b, 'bn_scale': bn_scale, 'bn_shift': bn_shift}


def prepare_fused_params(raw, *, in_channels, d_model, hidden_dim, H, W, grad_rate=1.0):
    """Fold bilinear resize + 'b i h w -> b w (i h)' + Linear into one matrix.

    w_fold[(c,h,w), (n,e)] = sum_d W[n, c*D + d] * mh[d, h] * mw[e, w]
    (exact: interpolation, rearrange and Linear are all linear maps).
    Done once, host side, outside jit.
    """
    C, D, N = in_channels, d_model, hidden_dim
    mh = _interp_matrix(D, H)                                  # (D, H)
    mw = _interp_matrix(D, W)                                  # (D, W)
    Wr = raw['w'].reshape(N, C, D)
    G = jnp.einsum('ncd,dh->nch', Wr, mh)                      # (N, C, H)
    w_fold = jnp.einsum('nch,ew->chwne', G, mw)                # (C, H, W, N, D)
    w_fold = w_fold.reshape(C * H * W, N * D)                  # rows (c,h,w), cols (n,e)

    inv_m = 1.0 / (D * grad_rate)
    # Column order is (n*D + e) -> repeat per-channel vectors D times consecutively.
    bias2 = jnp.repeat(raw['bias'], D)[None, :]                # (1, N*D)
    scale2 = jnp.repeat(raw['bn_scale'] * inv_m, D)[None, :]   # BN * 1/(m*grad_rate)
    shift2 = jnp.repeat(raw['bn_shift'] * inv_m, D)[None, :]
    return {'w_fold': w_fold, 'bias2': bias2, 'scale2': scale2, 'shift2': shift2}


# ----------------------------------------------------------------------------
# Net forward (Pallas-backed)
# ----------------------------------------------------------------------------
def net_forward(x, fused, *, d_model, hidden_dim):
    """x: (B, C, H, W) float32 (NCHW). Returns (B, hidden_dim * d_model * d_model)."""
    B = x.shape[0]
    D, N = d_model, hidden_dim
    x2d = x.reshape(B, -1)                                     # metadata-only reshape
    z = fused_linear_relu_bn(x2d, fused['w_fold'], fused['bias2'],
                             fused['scale2'], fused['shift2'])  # (B, N*D), cols = n*D+e
    # Trailing unsqueeze(-1).repeat(1,1,1,D).view(B,-1): each column repeated D times.
    out = jnp.broadcast_to(z[:, :, None], (B, N * D, D)).reshape(B, N * D * D)
    return out


# ----------------------------------------------------------------------------
# Pure-JAX reference (mirrors the PyTorch forward with eval-mode BatchNorm)
# ----------------------------------------------------------------------------
def reference_forward(x, raw, *, d_model, hidden_dim, grad_rate=1.0):
    B, C, H, W = x.shape
    D, N = d_model, hidden_dim
    mh = _interp_matrix(D, H)
    mw = _interp_matrix(D, W)
    xi = jnp.einsum('dh,bchw,ew->bcde', mh, x, mw)             # bilinear resize
    y = jnp.transpose(xi, (0, 3, 1, 2)).reshape(B, D, C * D)   # 'b i h w -> b w (i h)'
    lin = jnp.einsum('bek,nk->ben', y, raw['w']) + raw['bias']
    r = jnp.maximum(lin, 0.0)                                  # ReLU
    zt = jnp.transpose(r, (0, 2, 1))                           # 'b i c -> b c i'
    bn = zt * raw['bn_scale'][None, :, None] + raw['bn_shift'][None, :, None]
    out4 = jnp.broadcast_to(bn[..., None], (B, N, D, D))       # unsqueeze + repeat
    return out4.reshape(B, -1) / (D * grad_rate)


if __name__ == "__main__":
    # Net hyperparameters (consistent with Net.__init__)
    num_classes = 10
    band_nums = 2
    out_ch = 8
    in_channels = out_ch // band_nums     # 4
    time_dim = 16
    hidden_dim = 32
    d_model = 8
    grad_rate = 1.0

    key = jax.random.PRNGKey(0)
    k_x, k_p = jax.random.split(key)

    # Input: NCHW (B, in_channels, H, W)
    B, H, W = 2, 16, 16
    x = jax.random.normal(k_x, (B, in_channels, H, W), dtype=jnp.float32)

    raw = init_params(k_p, in_channels, d_model, hidden_dim)
    fused = prepare_fused_params(raw, in_channels=in_channels, d_model=d_model,
                                 hidden_dim=hidden_dim, H=H, W=W, grad_rate=grad_rate)

    fwd = jax.jit(functools.partial(net_forward, d_model=d_model, hidden_dim=hidden_dim))
    y = fwd(x, fused)
    jax.block_until_ready(y)

    assert y.shape == (B, hidden_dim * d_model * d_model), y.shape
    assert y.dtype == jnp.float32

    # Numerical check against the pure-JAX mirror of the PyTorch forward (eval-mode BN).
    y_ref = reference_forward(x, raw, d_model=d_model, hidden_dim=hidden_dim,
                              grad_rate=grad_rate)
    assert jnp.allclose(y, y_ref, rtol=1e-3, atol=1e-3), \
        float(jnp.max(jnp.abs(y - y_ref)))

    print("KERNEL_OK")
</pallas_src>

<mosaic_0001>
module attributes {stable_mosaic.version = 11 : i64} {
  func.func @_fused_kernel(%arg0: i32, %arg1: memref<2x1024xf32, #tpu.memory_space<vmem>>, %arg2: memref<1024x256xf32, #tpu.memory_space<vmem>>, %arg3: memref<1x256xf32, #tpu.memory_space<vmem>>, %arg4: memref<1x256xf32, #tpu.memory_space<vmem>>, %arg5: memref<1x256xf32, #tpu.memory_space<vmem>>, %arg6: memref<2x256xf32, #tpu.memory_space<vmem>>) attributes {dimension_semantics = [#tpu.dimension_semantics<arbitrary>], iteration_bounds = array<i64: 1>, scalar_prefetch = 0 : i64, scratch_operands = 0 : i64, tpu.core_type = #tpu.core_type<tc>, window_params = [{transform_indices = @transform_0, window_bounds = array<i64: 2, 1024>}, {pipeline_mode = #tpu.pipeline_mode<synchronous>, transform_indices = @transform_1, window_bounds = array<i64: 1024, 256>}, {pipeline_mode = #tpu.pipeline_mode<synchronous>, transform_indices = @transform_2, window_bounds = array<i64: 1, 256>}, {pipeline_mode = #tpu.pipeline_mode<synchronous>, transform_indices = @transform_3, window_bounds = array<i64: 1, 256>}, {pipeline_mode = #tpu.pipeline_mode<synchronous>, transform_indices = @transform_4, window_bounds = array<i64: 1, 256>}, {transform_indices = @transform_5, window_bounds = array<i64: 2, 256>}]} {
    %c0 = arith.constant 0 : index
    %c0_0 = arith.constant 0 : index
    %0 = vector.load %arg1[%c0, %c0_0] : memref<2x1024xf32, #tpu.memory_space<vmem>>, vector<2x1024xf32>
    %c0_1 = arith.constant 0 : index
    %c0_2 = arith.constant 0 : index
    %1 = vector.load %arg2[%c0_1, %c0_2] : memref<1024x256xf32, #tpu.memory_space<vmem>>, vector<1024x256xf32>
    %cst = arith.constant dense<0.000000e+00> : vector<2x256xf32>
    %2 = tpu.matmul %0, %1, %cst {dimension_numbers = #tpu.dot_dimension_numbers<[1], [0], [0], [1], [0, 0, 1, 1], [], []>} : vector<2x1024xf32>, vector<1024x256xf32>, vector<2x256xf32> -> vector<2x256xf32>
    %c0_3 = arith.constant 0 : index
    %c0_4 = arith.constant 0 : index
    %3 = vector.load %arg3[%c0_3, %c0_4] : memref<1x256xf32, #tpu.memory_space<vmem>>, vector<1x256xf32>
    %4 = vector.broadcast %3 : vector<1x256xf32> to vector<2x256xf32>
    %5 = arith.addf %2, %4 : vector<2x256xf32>
    %cst_5 = arith.constant 0.000000e+00 : f32
    %6 = vector.broadcast %cst_5 : f32 to vector<2x256xf32>
    %7 = arith.maximumf %5, %6 : vector<2x256xf32>
    %c0_6 = arith.constant 0 : index
    %c0_7 = arith.constant 0 : index
    %8 = vector.load %arg4[%c0_6, %c0_7] : memref<1x256xf32, #tpu.memory_space<vmem>>, vector<1x256xf32>
    %9 = vector.broadcast %8 : vector<1x256xf32> to vector<2x256xf32>
    %10 = arith.mulf %7, %9 : vector<2x256xf32>
    %c0_8 = arith.constant 0 : index
    %c0_9 = arith.constant 0 : index
    %11 = vector.load %arg5[%c0_8, %c0_9] : memref<1x256xf32, #tpu.memory_space<vmem>>, vector<1x256xf32>
    %12 = vector.broadcast %11 : vector<1x256xf32> to vector<2x256xf32>
    %13 = arith.addf %10, %12 : vector<2x256xf32>
    %c0_10 = arith.constant 0 : index
    %c0_11 = arith.constant 0 : index
    %14 = vector.load %arg6[%c0_10, %c0_11] : memref<2x256xf32, #tpu.memory_space<vmem>>, vector<2x256xf32>
    tpu.vector_store %arg6[%c0_10, %c0_11], %13 {strides = array<i32>} : memref<2x256xf32, #tpu.memory_space<vmem>>, vector<2x256xf32>,
    return
  }
  func.func @transform_0(%arg0: i32) -> (i32, i32) {
    %c0_i32 = arith.constant 0 : i32
    %c0_i32_0 = arith.constant 0 : i32
    return %arg0, %c0_i32 : i32, i32
  }
  func.func @transform_1(%arg0: i32) -> (i32, i32) {
    %c0_i32 = arith.constant 0 : i32
    %c0_i32_0 = arith.constant 0 : i32
    %c0_i32_1 = arith.constant 0 : i32
    return %c0_i32, %c0_i32_0 : i32, i32
  }
  func.func @transform_2(%arg0: i32) -> (i32, i32) {
    %c0_i32 = arith.constant 0 : i32
    %c0_i32_0 = arith.constant 0 : i32
    %c0_i32_1 = arith.constant 0 : i32
    return %c0_i32, %c0_i32_0 : i32, i32
  }
  func.func @transform_3(%arg0: i32) -> (i32, i32) {
    %c0_i32 = arith.constant 0 : i32
    %c0_i32_0 = arith.constant 0 : i32
    %c0_i32_1 = arith.constant 0 : i32
    return %c0_i32, %c0_i32_0 : i32, i32
  }
  func.func @transform_4(%arg0: i32) -> (i32, i32) {
    %c0_i32 = arith.constant 0 : i32
    %c0_i32_0 = arith.constant 0 : i32
    %c0_i32_1 = arith.constant 0 : i32
    return %c0_i32, %c0_i32_0 : i32, i32
  }
  func.func @transform_5(%arg0: i32) -> (i32, i32) {
    %c0_i32 = arith.constant 0 : i32
    %c0_i32_0 = arith.constant 0 : i32
    return %arg0, %c0_i32 : i32, i32
  }
}

</mosaic_0001>

<llo_original>
// kernel: net_forward.1
$region0: #{net_forward.1}
  #allocation0 [shape = 'u32[]', space=smem, size = 0x4, offset = 0x4, fixed_abs, tag = 'smem constant byte address 0x4 - core index']
  #allocation1 [shape = 'u32[72,128]{1,0:T(1,128)}', space=vmem, size = 0x9000, scoped, tag = 'internal scratch']
  %s0 = inlined_call_operand.vmem [shape: f32[2,1024], index: 0, kind: input, shape index: {}]
  %s1 = inlined_call_operand.hbm [shape: f32[1024,256], index: 1, kind: input, shape index: {}]
  %s2 = inlined_call_operand.vmem [shape: f32[1,256], index: 2, kind: input, shape index: {}]
  %s3 = inlined_call_operand.vmem [shape: f32[1,256], index: 3, kind: input, shape index: {}]
  %s4 = inlined_call_operand.vmem [shape: f32[1,256], index: 4, kind: input, shape index: {}]
  %s5 = inlined_call_operand.vmem [shape: f32[2,256], index: 5, kind: output, shape index: {}]
  %s6 = sld [smem:[#allocation0]]
  $region34: #{net_forward.1} parent=0
    _
  %s8 = ssub.s32 1, %s6
  %s9 = scalar_select 0, %s8, %s6
  $region1: #{net_forward.1} parent=0
    #allocation2 [shape = 'u8[1048576]{0}', space=vmem, size = 0x100000, scoped, tag = 'input window, operand 1, single buffered']
    #allocation3 [shape = 's32[1]{0}', space=sflag, size = 0x4, scoped, tag = 'scoped memory for net_forward.1']
    %10 = vsyncpa [#allocation3], 0
    // Predicated region
    $region2: #{net_forward.1} parent=1 // pred_check
      _
    $region3: #{net_forward.1} parent=1 // pred_check_branch
      %12 = sbr.rel (0) target = $region5
    $region4: #{net_forward.1} parent=1 // pred_region
      _
    $region5: #{net_forward.1} parent=1 // pred_fallthru
      _
    // Predicated region
    $region6: #{net_forward.1} parent=1 // pred_check
      _
    $region7: #{net_forward.1} parent=1 // pred_check_branch
      %14 = sbr.rel (0) target = $region9
    $region8: #{net_forward.1} parent=1 // pred_region
      %16 = vsyncadd [#allocation3], 0
      %s17 = sshll.u32 %s1, 4
      %s18 = int_to_ptr.hbm [resolvable:$true] %s17
      %s19 = sshll.u32 [#allocation2], 4
      %s20 = int_to_ptr.vmem [resolvable:$true] %s19
      %25 = dma.hbm_to_vmem [thread:$0]  %s18, 32768, %s20, [#allocation3], 256, 256, 16
    $region9: #{net_forward.1} parent=1 // pred_fallthru
      _
    // Predicated region
    $region10: #{net_forward.1} parent=1 // pred_check
      _
    $region11: #{net_forward.1} parent=1 // pred_check_branch
      %27 = sbr.rel (0) target = $region13
    $region12: #{net_forward.1} parent=1 // pred_region
      _
    $region13: #{net_forward.1} parent=1 // pred_fallthru
      _
    // Predicated region
    $region14: #{net_forward.1} parent=1 // pred_check
      _
    $region15: #{net_forward.1} parent=1 // pred_check_branch
      %29 = sbr.rel (0) target = $region17
    $region16: #{net_forward.1} parent=1 // pred_region
      _
    $region17: #{net_forward.1} parent=1 // pred_fallthru
      _
    // Predicated region
    $region18: #{net_forward.1} parent=1 // pred_check
      _
    $region19: #{net_forward.1} parent=1 // pred_check_branch
      %31 = sbr.rel (0) target = $region21
    $region20: #{net_forward.1} parent=1 // pred_region
      _
    $region21: #{net_forward.1} parent=1 // pred_fallthru
      _
    // Predicated region
    $region22: #{net_forward.1} parent=1 // pred_check
      _
    $region23: #{net_forward.1} parent=1 // pred_check_branch
      %33 = sbr.rel (0) target = $region25
    $region24: #{net_forward.1} parent=1 // pred_region
      %35 = dma.done [#allocation3], 32768
    $region25: #{net_forward.1} parent=1 // pred_fallthru
      _
    %v36 = vld [vmem:[%s0] sm:$0xff]
    %v37 = vld [vmem:[%s0 + $0x8] sm:$0xff]
    %v38 = vld [vmem:[#allocation2] sm:$0xff]
    %v39 = vld [vmem:[#allocation2 + $0x8] sm:$0xff]
    %v40 = vld [vmem:[#allocation2 + $0x10] sm:$0xff]
    %v41 = vld [vmem:[#allocation2 + $0x18] sm:$0xff]
    %v42 = vld [vmem:[#allocation2 + $0x20] sm:$0xff]
    %v43 = vld [vmem:[#allocation2 + $0x28] sm:$0xff]
    %v44 = vld [vmem:[#allocation2 + $0x30] sm:$0xff]
    %v45 = vld [vmem:[#allocation2 + $0x38] sm:$0xff]
    %v46 = vld [vmem:[#allocation2 + $0x40] sm:$0xff]
    %v47 = vld [vmem:[#allocation2 + $0x48] sm:$0xff]
    %v48 = vld [vmem:[#allocation2 + $0x50] sm:$0xff]
    %v49 = vld [vmem:[#allocation2 + $0x58] sm:$0xff]
    %v50 = vld [vmem:[#allocation2 + $0x60] sm:$0xff]
    %v51 = vld [vmem:[#allocation2 + $0x68] sm:$0xff]
    %v52 = vld [vmem:[#allocation2 + $0x70] sm:$0xff]
    %v53 = vld [vmem:[#allocation2 + $0x78] sm:$0xff]
    %v54 = vld [vmem:[#allocation2 + $0x80] sm:$0xff]
    %v55 = vld [vmem:[#allocation2 + $0x88] sm:$0xff]
    %v56 = vld [vmem:[#allocation2 + $0x90] sm:$0xff]
    %v57 = vld [vmem:[#allocation2 + $0x98] sm:$0xff]
    %v58 = vld [vmem:[#allocation2 + $0xa0] sm:$0xff]
    %v59 = vld [vmem:[#allocation2 + $0xa8] sm:$0xff]
    %v60 = vld [vmem:[#allocation2 + $0xb0] sm:$0xff]
    %v61 = vld [vmem:[#allocation2 + $0xb8] sm:$0xff]
    %v62 = vld [vmem:[#allocation2 + $0xc0] sm:$0xff]
    %v63 = vld [vmem:[#allocation2 + $0xc8] sm:$0xff]
    %v64 = vld [vmem:[#allocation2 + $0xd0] sm:$0xff]
    %v65 = vld [vmem:[#allocation2 + $0xd8] sm:$0xff]
    %v66 = vld [vmem:[#allocation2 + $0xe0] sm:$0xff]
    %v67 = vld [vmem:[#allocation2 + $0xe8] sm:$0xff]
    %v68 = vld [vmem:[#allocation2 + $0xf0] sm:$0xff]
    %v69 = vld [vmem:[#allocation2 + $0xf8] sm:$0xff]
    %v70 = vld [vmem:[#allocation2 + $0x100] sm:$0xff]
    %v71 = vld [vmem:[#allocation2 + $0x108] sm:$0xff]
    %v72 = vld [vmem:[#allocation2 + $0x110] sm:$0xff]
    %v73 = vld [vmem:[#allocation2 + $0x118] sm:$0xff]
    %v74 = vld [vmem:[#allocation2 + $0x120] sm:$0xff]
    %v75 = vld [vmem:[#allocation2 + $0x128] sm:$0xff]
    %v76 = vld [vmem:[#allocation2 + $0x130] sm:$0xff]
    %v77 = vld [vmem:[#allocation2 + $0x138] sm:$0xff]
    %v78 = vld [vmem:[#allocation2 + $0x140] sm:$0xff]
    %v79 = vld [vmem:[#allocation2 + $0x148] sm:$0xff]
    %v80 = vld [vmem:[#allocation2 + $0x150] sm:$0xff]
    %v81 = vld [vmem:[#allocation2 + $0x158] sm:$0xff]
    %v82 = vld [vmem:[#allocation2 + $0x160] sm:$0xff]
    %v83 = vld [vmem:[#allocation2 + $0x168] sm:$0xff]
    %v84 = vld [vmem:[#allocation2 + $0x170] sm:$0xff]
    %v85 = vld [vmem:[#allocation2 + $0x178] sm:$0xff]
    %v86 = vld [vmem:[#allocation2 + $0x180] sm:$0xff]
    %v87 = vld [vmem:[#allocation2 + $0x188] sm:$0xff]
    %v88 = vld [vmem:[#allocation2 + $0x190] sm:$0xff]
    %v89 = vld [vmem:[#allocation2 + $0x198] sm:$0xff]
    %v90 = vld [vmem:[#allocation2 + $0x1a0] sm:$0xff]
    %v91 = vld [vmem:[#allocation2 + $0x1a8] sm:$0xff]
    %v92 = vld [vmem:[#allocation2 + $0x1b0] sm:$0xff]
    %v93 = vld [vmem:[#allocation2 + $0x1b8] sm:$0xff]
    %v94 = vld [vmem:[#allocation2 + $0x1c0] sm:$0xff]
    %v95 = vld [vmem:[#allocation2 + $0x1c8] sm:$0xff]
    %v96 = vld [vmem:[#allocation2 + $0x1d0] sm:$0xff]
    %v97 = vld [vmem:[#allocation2 + $0x1d8] sm:$0xff]
    %v98 = vld [vmem:[#allocation2 + $0x1e0] sm:$0xff]
    %v99 = vld [vmem:[#allocation2 + $0x1e8] sm:$0xff]
    %v100 = vld [vmem:[#allocation2 + $0x1f0] sm:$0xff]
    %v101 = vld [vmem:[#allocation2 + $0x1f8] sm:$0xff]
    %v102 = vld [vmem:[#allocation2 + $0x200] sm:$0xff]
    %v103 = vld [vmem:[#allocation2 + $0x208] sm:$0xff]
    %v104 = vld [vmem:[#allocation2 + $0x210] sm:$0xff]
    %v105 = vld [vmem:[#allocation2 + $0x218] sm:$0xff]
    %v106 = vld [vmem:[#allocation2 + $0x220] sm:$0xff]
    %v107 = vld [vmem:[#allocation2 + $0x228] sm:$0xff]
    %v108 = vld [vmem:[#allocation2 + $0x230] sm:$0xff]
    %v109 = vld [vmem:[#allocation2 + $0x238] sm:$0xff]
    %v110 = vld [vmem:[#allocation2 + $0x240] sm:$0xff]
    %v111 = vld [vmem:[#allocation2 + $0x248] sm:$0xff]
    %v112 = vld [vmem:[#allocation2 + $0x250] sm:$0xff]
    %v113 = vld [vmem:[#allocation2 + $0x258] sm:$0xff]
    %v114 = vld [vmem:[#allocation2 + $0x260] sm:$0xff]
    %v115 = vld [vmem:[#allocation2 + $0x268] sm:$0xff]
    %v116 = vld [vmem:[#allocation2 + $0x270] sm:$0xff]
    %v117 = vld [vmem:[#allocation2 + $0x278] sm:$0xff]
    %v118 = vld [vmem:[#allocation2 + $0x280] sm:$0xff]
    %v119 = vld [vmem:[#allocation2 + $0x288] sm:$0xff]
    %v120 = vld [vmem:[#allocation2 + $0x290] sm:$0xff]
    %v121 = vld [vmem:[#allocation2 + $0x298] sm:$0xff]
    %v122 = vld [vmem:[#allocation2 + $0x2a0] sm:$0xff]
    %v123 = vld [vmem:[#allocation2 + $0x2a8] sm:$0xff]
    %v124 = vld [vmem:[#allocation2 + $0x2b0] sm:$0xff]
    %v125 = vld [vmem:[#allocation2 + $0x2b8] sm:$0xff]
    %v126 = vld [vmem:[#allocation2 + $0x2c0] sm:$0xff]
    %v127 = vld [vmem:[#allocation2 + $0x2c8] sm:$0xff]
    %v128 = vld [vmem:[#allocation2 + $0x2d0] sm:$0xff]
    %v129 = vld [vmem:[#allocation2 + $0x2d8] sm:$0xff]
    %v130 = vld [vmem:[#allocation2 + $0x2e0] sm:$0xff]
    %v131 = vld [vmem:[#allocation2 + $0x2e8] sm:$0xff]
    %v132 = vld [vmem:[#allocation2 + $0x2f0] sm:$0xff]
    %v133 = vld [vmem:[#allocation2 + $0x2f8] sm:$0xff]
    %v134 = vld [vmem:[#allocation2 + $0x300] sm:$0xff]
    %v135 = vld [vmem:[#allocation2 + $0x308] sm:$0xff]
    %v136 = vld [vmem:[#allocation2 + $0x310] sm:$0xff]
    %v137 = vld [vmem:[#allocation2 + $0x318] sm:$0xff]
    %v138 = vld [vmem:[#allocation2 + $0x320] sm:$0xff]
    %v139 = vld [vmem:[#allocation2 + $0x328] sm:$0xff]
    %v140 = vld [vmem:[#allocation2 + $0x330] sm:$0xff]
    %v141 = vld [vmem:[#allocation2 + $0x338] sm:$0xff]
    %v142 = vld [vmem:[#allocation2 + $0x340] sm:$0xff]
    %v143 = vld [vmem:[#allocation2 + $0x348] sm:$0xff]
    %v144 = vld [vmem:[#allocation2 + $0x350] sm:$0xff]
    %v145 = vld [vmem:[#allocation2 + $0x358] sm:$0xff]
    %v146 = vld [vmem:[#allocation2 + $0x360] sm:$0xff]
    %v147 = vld [vmem:[#allocation2 + $0x368] sm:$0xff]
    %v148 = vld [vmem:[#allocation2 + $0x370] sm:$0xff]
    %v149 = vld [vmem:[#allocation2 + $0x378] sm:$0xff]
    %v150 = vld [vmem:[#allocation2 + $0x380] sm:$0xff]
    %v151 = vld [vmem:[#allocation2 + $0x388] sm:$0xff]
    %v152 = vld [vmem:[#allocation2 + $0x390] sm:$0xff]
    %v153 = vld [vmem:[#allocation2 + $0x398] sm:$0xff]
    %v154 = vld [vmem:[#allocation2 + $0x3a0] sm:$0xff]
    %v155 = vld [vmem:[#allocation2 + $0x3a8] sm:$0xff]
    %v156 = vld [vmem:[#allocation2 + $0x3b0] sm:$0xff]
    %v157 = vld [vmem:[#allocation2 + $0x3b8] sm:$0xff]
    %v158 = vld [vmem:[#allocation2 + $0x3c0] sm:$0xff]
    %v159 = vld [vmem:[#allocation2 + $0x3c8] sm:$0xff]
    %v160 = vld [vmem:[#allocation2 + $0x3d0] sm:$0xff]
    %v161 = vld [vmem:[#allocation2 + $0x3d8] sm:$0xff]
    %v162 = vld [vmem:[#allocation2 + $0x3e0] sm:$0xff]
    %v163 = vld [vmem:[#allocation2 + $0x3e8] sm:$0xff]
    %v164 = vld [vmem:[#allocation2 + $0x3f0] sm:$0xff]
    %v165 = vld [vmem:[#allocation2 + $0x3f8] sm:$0xff]
    %v166 = vld [vmem:[#allocation2 + $0x400] sm:$0xff]
    %v167 = vld [vmem:[#allocation2 + $0x408] sm:$0xff]
    %v168 = vld [vmem:[#allocation2 + $0x410] sm:$0xff]
    %v169 = vld [vmem:[#allocation2 + $0x418] sm:$0xff]
    %v170 = vld [vmem:[#allocation2 + $0x420] sm:$0xff]
    %v171 = vld [vmem:[#allocation2 + $0x428] sm:$0xff]
    %v172 = vld [vmem:[#allocation2 + $0x430] sm:$0xff]
    %v173 = vld [vmem:[#allocation2 + $0x438] sm:$0xff]
    %v174 = vld [vmem:[#allocation2 + $0x440] sm:$0xff]
    %v175 = vld [vmem:[#allocation2 + $0x448] sm:$0xff]
    %v176 = vld [vmem:[#allocation2 + $0x450] sm:$0xff]
    %v177 = vld [vmem:[#allocation2 + $0x458] sm:$0xff]
    %v178 = vld [vmem:[#allocation2 + $0x460] sm:$0xff]
    %v179 = vld [vmem:[#allocation2 + $0x468] sm:$0xff]
    %v180 = vld [vmem:[#allocation2 + $0x470] sm:$0xff]
    %v181 = vld [vmem:[#allocation2 + $0x478] sm:$0xff]
    %v182 = vld [vmem:[#allocation2 + $0x480] sm:$0xff]
    %v183 = vld [vmem:[#allocation2 + $0x488] sm:$0xff]
    %v184 = vld [vmem:[#allocation2 + $0x490] sm:$0xff]
    %v185 = vld [vmem:[#allocation2 + $0x498] sm:$0xff]
    %v186 = vld [vmem:[#allocation2 + $0x4a0] sm:$0xff]
    %v187 = vld [vmem:[#allocation2 + $0x4a8] sm:$0xff]
    %v188 = vld [vmem:[#allocation2 + $0x4b0] sm:$0xff]
    %v189 = vld [vmem:[#allocation2 + $0x4b8] sm:$0xff]
    %v190 = vld [vmem:[#allocation2 + $0x4c0] sm:$0xff]
    %v191 = vld [vmem:[#allocation2 + $0x4c8] sm:$0xff]
    %v192 = vld [vmem:[#allocation2 + $0x4d0] sm:$0xff]
    %v193 = vld [vmem:[#allocation2 + $0x4d8] sm:$0xff]
    %v194 = vld [vmem:[#allocation2 + $0x4e0] sm:$0xff]
    %v195 = vld [vmem:[#allocation2 + $0x4e8] sm:$0xff]
    %v196 = vld [vmem:[#allocation2 + $0x4f0] sm:$0xff]
    %v197 = vld [vmem:[#allocation2 + $0x4f8] sm:$0xff]
    %v198 = vld [vmem:[#allocation2 + $0x500] sm:$0xff]
    %v199 = vld [vmem:[#allocation2 + $0x508] sm:$0xff]
    %v200 = vld [vmem:[#allocation2 + $0x510] sm:$0xff]
    %v201 = vld [vmem:[#allocation2 + $0x518] sm:$0xff]
    %v202 = vld [vmem:[#allocation2 + $0x520] sm:$0xff]
    %v203 = vld [vmem:[#allocation2 + $0x528] sm:$0xff]
    %v204 = vld [vmem:[#allocation2 + $0x530] sm:$0xff]
    %v205 = vld [vmem:[#allocation2 + $0x538] sm:$0xff]
    %v206 = vld [vmem:[#allocation2 + $0x540] sm:$0xff]
    %v207 = vld [vmem:[#allocation2 + $0x548] sm:$0xff]
    %v208 = vld [vmem:[#allocation2 + $0x550] sm:$0xff]
    %v209 = vld [vmem:[#allocation2 + $0x558] sm:$0xff]
    %v210 = vld [vmem:[#allocation2 + $0x560] sm:$0xff]
    %v211 = vld [vmem:[#allocation2 + $0x568] sm:$0xff]
    %v212 = vld [vmem:[#allocation2 + $0x570] sm:$0xff]
    %v213 = vld [vmem:[#allocation2 + $0x578] sm:$0xff]
    %v214 = vld [vmem:[#allocation2 + $0x580] sm:$0xff]
    %v215 = vld [vmem:[#allocation2 + $0x588] sm:$0xff]
    %v216 = vld [vmem:[#allocation2 + $0x590] sm:$0xff]
    %v217 = vld [vmem:[#allocation2 + $0x598] sm:$0xff]
    %v218 = vld [vmem:[#allocation2 + $0x5a0] sm:$0xff]
    %v219 = vld [vmem:[#allocation2 + $0x5a8] sm:$0xff]
    %v220 = vld [vmem:[#allocation2 + $0x5b0] sm:$0xff]
    %v221 = vld [vmem:[#allocation2 + $0x5b8] sm:$0xff]
    %v222 = vld [vmem:[#allocation2 + $0x5c0] sm:$0xff]
    %v223 = vld [vmem:[#allocation2 + $0x5c8] sm:$0xff]
    %v224 = vld [vmem:[#allocation2 + $0x5d0] sm:$0xff]
    %v225 = vld [vmem:[#allocation2 + $0x5d8] sm:$0xff]
    %v226 = vld [vmem:[#allocation2 + $0x5e0] sm:$0xff]
    %v227 = vld [vmem:[#allocation2 + $0x5e8] sm:$0xff]
    %v228 = vld [vmem:[#allocation2 + $0x5f0] sm:$0xff]
    %v229 = vld [vmem:[#allocation2 + $0x5f8] sm:$0xff]
    %v230 = vld [vmem:[#allocation2 + $0x600] sm:$0xff]
    %v231 = vld [vmem:[#allocation2 + $0x608] sm:$0xff]
    %v232 = vld [vmem:[#allocation2 + $0x610] sm:$0xff]
    %v233 = vld [vmem:[#allocation2 + $0x618] sm:$0xff]
    %v234 = vld [vmem:[#allocation2 + $0x620] sm:$0xff]
    %v235 = vld [vmem:[#allocation2 + $0x628] sm:$0xff]
    %v236 = vld [vmem:[#allocation2 + $0x630] sm:$0xff]
    %v237 = vld [vmem:[#allocation2 + $0x638] sm:$0xff]
    %v238 = vld [vmem:[#allocation2 + $0x640] sm:$0xff]
    %v239 = vld [vmem:[#allocation2 + $0x648] sm:$0xff]
    %v240 = vld [vmem:[#allocation2 + $0x650] sm:$0xff]
    %v241 = vld [vmem:[#allocation2 + $0x658] sm:$0xff]
    %v242 = vld [vmem:[#allocation2 + $0x660] sm:$0xff]
    %v243 = vld [vmem:[#allocation2 + $0x668] sm:$0xff]
    %v244 = vld [vmem:[#allocation2 + $0x670] sm:$0xff]
    %v245 = vld [vmem:[#allocation2 + $0x678] sm:$0xff]
    %v246 = vld [vmem:[#allocation2 + $0x680] sm:$0xff]
    %v247 = vld [vmem:[#allocation2 + $0x688] sm:$0xff]
    %v248 = vld [vmem:[#allocation2 + $0x690] sm:$0xff]
    %v249 = vld [vmem:[#allocation2 + $0x698] sm:$0xff]
    %v250 = vld [vmem:[#allocation2 + $0x6a0] sm:$0xff]
    %v251 = vld [vmem:[#allocation2 + $0x6a8] sm:$0xff]
    %v252 = vld [vmem:[#allocation2 + $0x6b0] sm:$0xff]
    %v253 = vld [vmem:[#allocation2 + $0x6b8] sm:$0xff]
    %v254 = vld [vmem:[#allocation2 + $0x6c0] sm:$0xff]
    %v255 = vld [vmem:[#allocation2 + $0x6c8] sm:$0xff]
    %v256 = vld [vmem:[#allocation2 + $0x6d0] sm:$0xff]
    %v257 = vld [vmem:[#allocation2 + $0x6d8] sm:$0xff]
    %v258 = vld [vmem:[#allocation2 + $0x6e0] sm:$0xff]
    %v259 = vld [vmem:[#allocation2 + $0x6e8] sm:$0xff]
    %v260 = vld [vmem:[#allocation2 + $0x6f0] sm:$0xff]
    %v261 = vld [vmem:[#allocation2 + $0x6f8] sm:$0xff]
    %v262 = vld [vmem:[#allocation2 + $0x700] sm:$0xff]
    %v263 = vld [vmem:[#allocation2 + $0x708] sm:$0xff]
    %v264 = vld [vmem:[#allocation2 + $0x710] sm:$0xff]
    %v265 = vld [vmem:[#allocation2 + $0x718] sm:$0xff]
    %v266 = vld [vmem:[#allocation2 + $0x720] sm:$0xff]
    %v267 = vld [vmem:[#allocation2 + $0x728] sm:$0xff]
    %v268 = vld [vmem:[#allocation2 + $0x730] sm:$0xff]
    %v269 = vld [vmem:[#allocation2 + $0x738] sm:$0xff]
    %v270 = vld [vmem:[#allocation2 + $0x740] sm:$0xff]
    %v271 = vld [vmem:[#allocation2 + $0x748] sm:$0xff]
    %v272 = vld [vmem:[#allocation2 + $0x750] sm:$0xff]
    %v273 = vld [vmem:[#allocation2 + $0x758] sm:$0xff]
    %v274 = vld [vmem:[#allocation2 + $0x760] sm:$0xff]
    %v275 = vld [vmem:[#allocation2 + $0x768] sm:$0xff]
    %v276 = vld [vmem:[#allocation2 + $0x770] sm:$0xff]
    %v277 = vld [vmem:[#allocation2 + $0x778] sm:$0xff]
    %v278 = vld [vmem:[#allocation2 + $0x780] sm:$0xff]
    %v279 = vld [vmem:[#allocation2 + $0x788] sm:$0xff]
    %v280 = vld [vmem:[#allocation2 + $0x790] sm:$0xff]
    %v281 = vld [vmem:[#allocation2 + $0x798] sm:$0xff]
    %v282 = vld [vmem:[#allocation2 + $0x7a0] sm:$0xff]
    %v283 = vld [vmem:[#allocation2 + $0x7a8] sm:$0xff]
    %v284 = vld [vmem:[#allocation2 + $0x7b0] sm:$0xff]
    %v285 = vld [vmem:[#allocation2 + $0x7b8] sm:$0xff]
    %v286 = vld [vmem:[#allocation2 + $0x7c0] sm:$0xff]
    %v287 = vld [vmem:[#allocation2 + $0x7c8] sm:$0xff]
    %v288 = vld [vmem:[#allocation2 + $0x7d0] sm:$0xff]
    %v289 = vld [vmem:[#allocation2 + $0x7d8] sm:$0xff]
    %v290 = vld [vmem:[#allocation2 + $0x7e0] sm:$0xff]
    %v291 = vld [vmem:[#allocation2 + $0x7e8] sm:$0xff]
    %v292 = vld [vmem:[#allocation2 + $0x7f0] sm:$0xff]
    %v293 = vld [vmem:[#allocation2 + $0x7f8] sm:$0xff]
    %v294 = vld [vmem:[%s2] sm:$0x3]
    %v296 = vperm.slane %v294, 0
    %v297 = vperm.slane %v294, 1
    %302 = vst [vmem:[#allocation1] ss:$4 sm:$0xff] %v36
    %s303 = scalar_lea.vmem [#allocation1], 32
    %304 = vst [vmem:[%s303] ss:$4 sm:$0xff] %v37
    %v305 = vld.sshfl [vmem:[#allocation1] sm:$0xff pattern:$0x73625140]
    %v306 = vld.sshfl [vmem:[#allocation1 + $0x8] sm:$0xff pattern:$0x73625140]
    %v307 = vld.sshfl [vmem:[#allocation1 + $0x10] sm:$0xff pattern:$0x73625140]
    %v308 = vld.sshfl [vmem:[#allocation1 + $0x18] sm:$0xff pattern:$0x73625140]
    %v309 = vld.sshfl [vmem:[#allocation1 + $0x20] sm:$0xff pattern:$0x73625140]
    %v310 = vld.sshfl [vmem:[#allocation1 + $0x28] sm:$0xff pattern:$0x73625140]
    %v311 = vld.sshfl [vmem:[#allocation1 + $0x30] sm:$0xff pattern:$0x73625140]
    %v312 = vld.sshfl [vmem:[#allocation1 + $0x38] sm:$0xff pattern:$0x73625140]
    %321 = vmatpush.msra.mxu0 %v68
    %322 = vmatpush.msra.mxu0 %v66
    %323 = vmatpush.msra.mxu0 %v64
    %324 = vmatpush.msra.mxu0 %v62
    %325 = vmatpush.msra.mxu0 %v60
    %326 = vmatpush.msra.mxu0 %v58
    %327 = vmatpush.msra.mxu0 %v56
    %328 = vmatpush.msra.mxu0 %v54
    %329 = vmatpush.msra.mxu0 %v52
    %330 = vmatpush.msra.mxu0 %v50
    %331 = vmatpush.msra.mxu0 %v48
    %332 = vmatpush.msra.mxu0 %v46
    %333 = vmatpush.msra.mxu0 %v44
    %334 = vmatpush.msra.mxu0 %v42
    %335 = vmatpush.msra.mxu0 %v40
    %336 = vmatpush.msra.mxu0 %v38
    %337 = vmatmul.f32.gmra.mxu0 %v305
    %v338 = vpop.f32.mrf.mxu0
    %v339 = vadd.f32 %v296, %v338
    %340 = vdwg.mxu0
    %341 = vmatpush.msra.mxu0 %v100
    %342 = vmatpush.msra.mxu0 %v98
    %343 = vmatpush.msra.mxu0 %v96
    %344 = vmatpush.msra.mxu0 %v94
    %345 = vmatpush.msra.mxu0 %v92
    %346 = vmatpush.msra.mxu0 %v90
    %347 = vmatpush.msra.mxu0 %v88
    %348 = vmatpush.msra.mxu0 %v86
    %349 = vmatpush.msra.mxu0 %v84
    %350 = vmatpush.msra.mxu0 %v82
    %351 = vmatpush.msra.mxu0 %v80
    %352 = vmatpush.msra.mxu0 %v78
    %353 = vmatpush.msra.mxu0 %v76
    %354 = vmatpush.msra.mxu0 %v74
    %355 = vmatpush.msra.mxu0 %v72
    %356 = vmatpush.msra.mxu0 %v70
    %357 = vmatmul.f32.gmra.mxu0 %v306
    %v358 = vpop.f32.mrf.mxu0
    %v359 = vadd.f32 %v339, %v358
    %360 = vdwg.mxu0
    %361 = vmatpush.msra.mxu0 %v132
    %362 = vmatpush.msra.mxu0 %v130
    %363 = vmatpush.msra.mxu0 %v128
    %364 = vmatpush.msra.mxu0 %v126
    %365 = vmatpush.msra.mxu0 %v124
    %366 = vmatpush.msra.mxu0 %v122
    %367 = vmatpush.msra.mxu0 %v120
    %368 = vmatpush.msra.mxu0 %v118
    %369 = vmatpush.msra.mxu0 %v116
    %370 = vmatpush.msra.mxu0 %v114
    %371 = vmatpush.msra.mxu0 %v112
    %372 = vmatpush.msra.mxu0 %v110
    %373 = vmatpush.msra.mxu0 %v108
    %374 = vmatpush.msra.mxu0 %v106
    %375 = vmatpush.msra.mxu0 %v104
    %376 = vmatpush.msra.mxu0 %v102
    %377 = vmatmul.f32.gmra.mxu0 %v307
    %v378 = vpop.f32.mrf.mxu0
    %v379 = vadd.f32 %v359, %v378
    %380 = vdwg.mxu0
    %381 = vmatpush.msra.mxu0 %v164
    %382 = vmatpush.msra.mxu0 %v162
    %383 = vmatpush.msra.mxu0 %v160
    %384 = vmatpush.msra.mxu0 %v158
    %385 = vmatpush.msra.mxu0 %v156
    %386 = vmatpush.msra.mxu0 %v154
    %387 = vmatpush.msra.mxu0 %v152
    %388 = vmatpush.msra.mxu0 %v150
    %389 = vmatpush.msra.mxu0 %v148
    %390 = vmatpush.msra.mxu0 %v146
    %391 = vmatpush.msra.mxu0 %v144
    %392 = vmatpush.msra.mxu0 %v142
    %393 = vmatpush.msra.mxu0 %v140
    %394 = vmatpush.msra.mxu0 %v138
    %395 = vmatpush.msra.mxu0 %v136
    %396 = vmatpush.msra.mxu0 %v134
    %397 = vmatmul.f32.gmra.mxu0 %v308
    %v398 = vpop.f32.mrf.mxu0
    %v399 = vadd.f32 %v379, %v398
    %400 = vdwg.mxu0
    %401 = vmatpush.msra.mxu0 %v196
    %402 = vmatpush.msra.mxu0 %v194
    %403 = vmatpush.msra.mxu0 %v192
    %404 = vmatpush.msra.mxu0 %v190
    %405 = vmatpush.msra.mxu0 %v188
    %406 = vmatpush.msra.mxu0 %v186
    %407 = vmatpush.msra.mxu0 %v184
    %408 = vmatpush.msra.mxu0 %v182
    %409 = vmatpush.msra.mxu0 %v180
    %410 = vmatpush.msra.mxu0 %v178
    %411 = vmatpush.msra.mxu0 %v176
    %412 = vmatpush.msra.mxu0 %v174
    %413 = vmatpush.msra.mxu0 %v172
    %414 = vmatpush.msra.mxu0 %v170
    %415 = vmatpush.msra.mxu0 %v168
    %416 = vmatpush.msra.mxu0 %v166
    %417 = vmatmul.f32.gmra.mxu0 %v309
    %v418 = vpop.f32.mrf.mxu0
    %v419 = vadd.f32 %v399, %v418
    %420 = vdwg.mxu0
    %421 = vmatpush.msra.mxu0 %v228
    %422 = vmatpush.msra.mxu0 %v226
    %423 = vmatpush.msra.mxu0 %v224
    %424 = vmatpush.msra.mxu0 %v222
    %425 = vmatpush.msra.mxu0 %v220
    %426 = vmatpush.msra.mxu0 %v218
    %427 = vmatpush.msra.mxu0 %v216
    %428 = vmatpush.msra.mxu0 %v214
    %429 = vmatpush.msra.mxu0 %v212
    %430 = vmatpush.msra.mxu0 %v210
    %431 = vmatpush.msra.mxu0 %v208
    %432 = vmatpush.msra.mxu0 %v206
    %433 = vmatpush.msra.mxu0 %v204
    %434 = vmatpush.msra.mxu0 %v202
    %435 = vmatpush.msra.mxu0 %v200
    %436 = vmatpush.msra.mxu0 %v198
    %437 = vmatmul.f32.gmra.mxu0 %v310
    %v438 = vpop.f32.mrf.mxu0
    %v439 = vadd.f32 %v419, %v438
    %440 = vdwg.mxu0
    %441 = vmatpush.msra.mxu0 %v260
    %442 = vmatpush.msra.mxu0 %v258
    %443 = vmatpush.msra.mxu0 %v256
    %444 = vmatpush.msra.mxu0 %v254
    %445 = vmatpush.msra.mxu0 %v252
    %446 = vmatpush.msra.mxu0 %v250
    %447 = vmatpush.msra.mxu0 %v248
    %448 = vmatpush.msra.mxu0 %v246
    %449 = vmatpush.msra.mxu0 %v244
    %450 = vmatpush.msra.mxu0 %v242
    %451 = vmatpush.msra.mxu0 %v240
    %452 = vmatpush.msra.mxu0 %v238
    %453 = vmatpush.msra.mxu0 %v236
    %454 = vmatpush.msra.mxu0 %v234
    %455 = vmatpush.msra.mxu0 %v232
    %456 = vmatpush.msra.mxu0 %v230
    %457 = vmatmul.f32.gmra.mxu0 %v311
    %v458 = vpop.f32.mrf.mxu0
    %v459 = vadd.f32 %v439, %v458
    %460 = vdwg.mxu0
    %461 = vmatpush.msra.mxu0 %v292
    %462 = vmatpush.msra.mxu0 %v290
    %463 = vmatpush.msra.mxu0 %v288
    %464 = vmatpush.msra.mxu0 %v286
    %465 = vmatpush.msra.mxu0 %v284
    %466 = vmatpush.msra.mxu0 %v282
    %467 = vmatpush.msra.mxu0 %v280
    %468 = vmatpush.msra.mxu0 %v278
    %469 = vmatpush.msra.mxu0 %v276
    %470 = vmatpush.msra.mxu0 %v274
    %471 = vmatpush.msra.mxu0 %v272
    %472 = vmatpush.msra.mxu0 %v270
    %473 = vmatpush.msra.mxu0 %v268
    %474 = vmatpush.msra.mxu0 %v266
    %475 = vmatpush.msra.mxu0 %v264
    %476 = vmatpush.msra.mxu0 %v262
    %477 = vmatmul.f32.gmra.mxu0 %v312
    %v478 = vpop.f32.mrf.mxu0
    %v479 = vadd.f32 %v459, %v478
    %480 = vdwg.mxu0
    %481 = vmatpush.msra.mxu0 %v69
    %482 = vmatpush.msra.mxu0 %v67
    %483 = vmatpush.msra.mxu0 %v65
    %484 = vmatpush.msra.mxu0 %v63
    %485 = vmatpush.msra.mxu0 %v61
    %486 = vmatpush.msra.mxu0 %v59
    %487 = vmatpush.msra.mxu0 %v57
    %488 = vmatpush.msra.mxu0 %v55
    %489 = vmatpush.msra.mxu0 %v53
    %490 = vmatpush.msra.mxu0 %v51
    %491 = vmatpush.msra.mxu0 %v49
    %492 = vmatpush.msra.mxu0 %v47
    %493 = vmatpush.msra.mxu0 %v45
    %494 = vmatpush.msra.mxu0 %v43
    %495 = vmatpush.msra.mxu0 %v41
    %496 = vmatpush.msra.mxu0 %v39
    %497 = vmatmul.f32.gmra.mxu0 %v305
    %v498 = vpop.f32.mrf.mxu0
    %v499 = vadd.f32 %v297, %v498
    %500 = vdwg.mxu0
    %501 = vmatpush.msra.mxu0 %v101
    %502 = vmatpush.msra.mxu0 %v99
    %503 = vmatpush.msra.mxu0 %v97
    %504 = vmatpush.msra.mxu0 %v95
    %505 = vmatpush.msra.mxu0 %v93
    %506 = vmatpush.msra.mxu0 %v91
    %507 = vmatpush.msra.mxu0 %v89
    %508 = vmatpush.msra.mxu0 %v87
    %509 = vmatpush.msra.mxu0 %v85
    %510 = vmatpush.msra.mxu0 %v83
    %511 = vmatpush.msra.mxu0 %v81
    %512 = vmatpush.msra.mxu0 %v79
    %513 = vmatpush.msra.mxu0 %v77
    %514 = vmatpush.msra.mxu0 %v75
    %515 = vmatpush.msra.mxu0 %v73
    %516 = vmatpush.msra.mxu0 %v71
    %517 = vmatmul.f32.gmra.mxu0 %v306
    %v518 = vpop.f32.mrf.mxu0
    %v519 = vadd.f32 %v499, %v518
    %520 = vdwg.mxu0
    %521 = vmatpush.msra.mxu0 %v133
    %522 = vmatpush.msra.mxu0 %v131
    %523 = vmatpush.msra.mxu0 %v129
    %524 = vmatpush.msra.mxu0 %v127
    %525 = vmatpush.msra.mxu0 %v125
    %526 = vmatpush.msra.mxu0 %v123
    %527 = vmatpush.msra.mxu0 %v121
    %528 = vmatpush.msra.mxu0 %v119
    %529 = vmatpush.msra.mxu0 %v117
    %530 = vmatpush.msra.mxu0 %v115
    %531 = vmatpush.msra.mxu0 %v113
    %532 = vmatpush.msra.mxu0 %v111
    %533 = vmatpush.msra.mxu0 %v109
    %534 = vmatpush.msra.mxu0 %v107
    %535 = vmatpush.msra.mxu0 %v105
    %536 = vmatpush.msra.mxu0 %v103
    %537 = vmatmul.f32.gmra.mxu0 %v307
    %v538 = vpop.f32.mrf.mxu0
    %v539 = vadd.f32 %v519, %v538
    %540 = vdwg.mxu0
    %541 = vmatpush.msra.mxu0 %v165
    %542 = vmatpush.msra.mxu0 %v163
    %543 = vmatpush.msra.mxu0 %v161
    %544 = vmatpush.msra.mxu0 %v159
    %545 = vmatpush.msra.mxu0 %v157
    %546 = vmatpush.msra.mxu0 %v155
    %547 = vmatpush.msra.mxu0 %v153
    %548 = vmatpush.msra.mxu0 %v151
    %549 = vmatpush.msra.mxu0 %v149
    %550 = vmatpush.msra.mxu0 %v147
    %551 = vmatpush.msra.mxu0 %v145
    %552 = vmatpush.msra.mxu0 %v143
    %553 = vmatpush.msra.mxu0 %v141
    %554 = vmatpush.msra.mxu0 %v139
    %555 = vmatpush.msra.mxu0 %v137
    %556 = vmatpush.msra.mxu0 %v135
    %557 = vmatmul.f32.gmra.mxu0 %v308
    %v558 = vpop.f32.mrf.mxu0
    %v559 = vadd.f32 %v539, %v558
    %560 = vdwg.mxu0
    %561 = vmatpush.msra.mxu0 %v197
    %562 = vmatpush.msra.mxu0 %v195
    %563 = vmatpush.msra.mxu0 %v193
    %564 = vmatpush.msra.mxu0 %v191
    %565 = vmatpush.msra.mxu0 %v189
    %566 = vmatpush.msra.mxu0 %v187
    %567 = vmatpush.msra.mxu0 %v185
    %568 = vmatpush.msra.mxu0 %v183
    %569 = vmatpush.msra.mxu0 %v181
    %570 = vmatpush.msra.mxu0 %v179
    %571 = vmatpush.msra.mxu0 %v177
    %572 = vmatpush.msra.mxu0 %v175
    %573 = vmatpush.msra.mxu0 %v173
    %574 = vmatpush.msra.mxu0 %v171
    %575 = vmatpush.msra.mxu0 %v169
    %576 = vmatpush.msra.mxu0 %v167
    %577 = vmatmul.f32.gmra.mxu0 %v309
    %v578 = vpop.f32.mrf.mxu0
    %v579 = vadd.f32 %v559, %v578
    %580 = vdwg.mxu0
    %581 = vmatpush.msra.mxu0 %v229
    %582 = vmatpush.msra.mxu0 %v227
    %583 = vmatpush.msra.mxu0 %v225
    %584 = vmatpush.msra.mxu0 %v223
    %585 = vmatpush.msra.mxu0 %v221
    %586 = vmatpush.msra.mxu0 %v219
    %587 = vmatpush.msra.mxu0 %v217
    %588 = vmatpush.msra.mxu0 %v215
    %589 = vmatpush.msra.mxu0 %v213
    %590 = vmatpush.msra.mxu0 %v211
    %591 = vmatpush.msra.mxu0 %v209
    %592 = vmatpush.msra.mxu0 %v207
    %593 = vmatpush.msra.mxu0 %v205
    %594 = vmatpush.msra.mxu0 %v203
    %595 = vmatpush.msra.mxu0 %v201
    %596 = vmatpush.msra.mxu0 %v199
    %597 = vmatmul.f32.gmra.mxu0 %v310
    %v598 = vpop.f32.mrf.mxu0
    %v599 = vadd.f32 %v579, %v598
    %600 = vdwg.mxu0
    %601 = vmatpush.msra.mxu0 %v261
    %602 = vmatpush.msra.mxu0 %v259
    %603 = vmatpush.msra.mxu0 %v257
    %604 = vmatpush.msra.mxu0 %v255
    %605 = vmatpush.msra.mxu0 %v253
    %606 = vmatpush.msra.mxu0 %v251
    %607 = vmatpush.msra.mxu0 %v249
    %608 = vmatpush.msra.mxu0 %v247
    %609 = vmatpush.msra.mxu0 %v245
    %610 = vmatpush.msra.mxu0 %v243
    %611 = vmatpush.msra.mxu0 %v241
    %612 = vmatpush.msra.mxu0 %v239
    %613 = vmatpush.msra.mxu0 %v237
    %614 = vmatpush.msra.mxu0 %v235
    %615 = vmatpush.msra.mxu0 %v233
    %616 = vmatpush.msra.mxu0 %v231
    %617 = vmatmul.f32.gmra.mxu0 %v311
    %v618 = vpop.f32.mrf.mxu0
    %v619 = vadd.f32 %v599, %v618
    %620 = vdwg.mxu0
    %621 = vmatpush.msra.mxu0 %v293
    %622 = vmatpush.msra.mxu0 %v291
    %623 = vmatpush.msra.mxu0 %v289
    %624 = vmatpush.msra.mxu0 %v287
    %625 = vmatpush.msra.mxu0 %v285
    %626 = vmatpush.msra.mxu0 %v283
    %627 = vmatpush.msra.mxu0 %v281
    %628 = vmatpush.msra.mxu0 %v279
    %629 = vmatpush.msra.mxu0 %v277
    %630 = vmatpush.msra.mxu0 %v275
    %631 = vmatpush.msra.mxu0 %v273
    %632 = vmatpush.msra.mxu0 %v271
    %633 = vmatpush.msra.mxu0 %v269
    %634 = vmatpush.msra.mxu0 %v267
    %635 = vmatpush.msra.mxu0 %v265
    %636 = vmatpush.msra.mxu0 %v263
    %637 = vmatmul.f32.gmra.mxu0 %v312
    %v638 = vpop.f32.mrf.mxu0
    %v639 = vadd.f32 %v619, %v638
    %640 = vdwg.mxu0
    %v641 = vmax.f32 %v479, 0.0
    %v642 = vmax.f32 %v639, 0.0
    %v643 = vld [vmem:[%s3] sm:$0x3]
    %v645 = vperm.slane %v643, 0
    %v646 = vperm.slane %v643, 1
    %v649 = vmul.f32 %v641, %v645
    %v650 = vmul.f32 %v642, %v646
    %v651 = vld [vmem:[%s4] sm:$0x3]
    %v653 = vperm.slane %v651, 0
    %v654 = vperm.slane %v651, 1
    %v657 = vadd.f32 %v649, %v653
    %v658 = vadd.f32 %v650, %v654
    %v661 = vrot.slane %v658, 6
    %vm662 = vcmask 1041408
    %v663 = vsel %vm662, %v657, %v661
    %665 = vst [vmem:[%s5] sm:$0xf] %v663
    // Predicated region
    $region26: #{net_forward.1} parent=1 // pred_check
      _
    $region27: #{net_forward.1} parent=1 // pred_check_branch
      %667 = sbr.rel (0) target = $region29
    $region28: #{net_forward.1} parent=1 // pred_region
      _
    $region29: #{net_forward.1} parent=1 // pred_fallthru
      _
    // Predicated region
    $region30: #{net_forward.1} parent=1 // pred_check
      _
    $region31: #{net_forward.1} parent=1 // pred_check_branch
      %669 = sbr.rel (0) target = $region33
    $region32: #{net_forward.1} parent=1 // pred_region
      _
    $region33: #{net_forward.1} parent=1 // pred_fallthru
      _
    %670 = vsyncpa [#allocation3], 1

</llo_original>
